<compile_context>
chip_gen: v7x
topology: tpu7x:2x2x1
jax: 0.10.0
libtpu: 0.0.40
codegen_flags: <defaults>
</compile_context>

<pallas_src>
import functools
import math
from collections import namedtuple

import jax
import jax.numpy as jnp
from jax.experimental import pallas as pl
from jax.experimental.pallas import tpu as pltpu


_SQRT_2_OVER_PI = math.sqrt(2.0 / math.pi)
_GELU_COEF = 0.044715

# Ragged sizes up to this many *bytes* run as a single full-extent (1, n)
# block.  Kept modest because a (1, n) VMEM buffer pads to 8 sublanes (8x
# footprint); 512 KiB data -> <= ~4 MiB/buffer even in the worst case.
_RAGGED_SINGLE_BLOCK_BYTES = 512 * 1024

# Block size (elements) for the very-large-ragged 1-D fallback.  Multiple of
# 1024; small enough that even an 8x-padded VMEM layout stays well inside
# every generation's scoped VMEM.
_RAGGED_1D_BLOCK_ELEMS = 131072


def _gelu_kernel(x_ref, o_ref):
    x = x_ref[...]
    # f32 compute for the transcendental; cast back to the input dtype.
    xf = x.astype(jnp.float32)
    inner = _SQRT_2_OVER_PI * (xf + _GELU_COEF * (xf * xf * xf))
    y = 0.5 * xf * (1.0 + jnp.tanh(inner))   # single EUP tanh per element
    o_ref[...] = y.astype(o_ref.dtype)


# ----------------------------------------------------------------------------
# Per-generation tiling configuration.
# ----------------------------------------------------------------------------

_TpuCfg = namedtuple("_TpuCfg", ["cores", "target_block_bytes", "vmem_limit_bytes"])


@functools.lru_cache(maxsize=1)
def _tpu_config():
    """Block-size target, core count and VMEM limit for the local TPU generation."""
    kind = ""
    try:
        kind = jax.devices()[0].device_kind.lower()
    except Exception:
        pass
    if "v7" in kind:
        # 3.2 TB/s HBM: big blocks matter most.  8 MiB block x4 (in+out,
        # double-buffered) = 32 MiB <= 48 MiB limit <= 64 MiB physical/TC.
        return _TpuCfg(cores=2, target_block_bytes=8 << 20, vmem_limit_bytes=48 << 20)
    if "v6" in kind:
        # 1.4 TB/s HBM, 128 MiB physical VMEM, 32 MiB scoped default.
        return _TpuCfg(cores=1, target_block_bytes=4 << 20, vmem_limit_bytes=64 << 20)
    if "v5" in kind and ("lite" in kind or "v5e" in kind):
        # v5e: 16 MiB scoped default -> raise it so 2 MiB blocks (8 MiB
        # footprint) always fit with headroom.
        return _TpuCfg(cores=1, target_block_bytes=2 << 20, vmem_limit_bytes=32 << 20)
    if "v5" in kind or "v4" in kind:
        # v5p / v4 megacore: two TensorCores share the grid.
        return _TpuCfg(cores=2, target_block_bytes=4 << 20, vmem_limit_bytes=64 << 20)
    # Unknown / older generation: conservative defaults, keep compiler default VMEM limit.
    return _TpuCfg(cores=1, target_block_bytes=2 << 20, vmem_limit_bytes=None)


def _round_up(a, b):
    return ((a + b - 1) // b) * b


def _sublane_pack(itemsize):
    """Rows per native sublane tile: 8 for 32-bit, 16 for bf16/f16, 32 for int8/fp8."""
    return 8 * max(1, 4 // max(1, itemsize))


# Candidate lane widths (multiples of 128), largest first.
_LANE_CANDIDATES = (2048, 1024, 512, 256, 128)


def _pick_lane_width(n, min_rows):
    """Largest candidate W dividing n, preferring W with n//W >= min_rows rows."""
    best = None
    for w in _LANE_CANDIDATES:
        if n % w == 0:
            if best is None:
                best = w
            if n // w >= min_rows:
                return w
    return best


def _pick_tile_rows(rows, cols, itemsize, cores, target_block_bytes):
    """Row-tile size: ~target-byte blocks, dtype-aligned rows, megacore-balanced grid."""
    sub = _sublane_pack(itemsize)
    if rows <= sub:
        return rows                                  # full-dim block (always legal)
    bytes_per_row = max(1, cols * itemsize)
    tr = max(sub, (target_block_bytes // bytes_per_row) // sub * sub)
    if cores >= 2 and rows >= 2 * cores * sub:
        # Give each TensorCore at least 2 blocks, and prefer a grid that
        # divides evenly across cores (a grid of 3 on 2 cores is ~1.5x wall).
        cap = _round_up(pl.cdiv(rows, 2 * cores), sub)
        tr = min(tr, cap)
        for _ in range(64):
            if tr <= sub or pl.cdiv(rows, tr) % cores == 0:
                break
            tr -= sub
    if tr >= rows:
        return rows                                   # single full-dim block
    return tr


# ----------------------------------------------------------------------------
# pallas_call wrappers.
# ----------------------------------------------------------------------------

def _compiler_params(cfg):
    return pltpu.CompilerParams(
        dimension_semantics=("parallel",),
        vmem_limit_bytes=cfg.vmem_limit_bytes,
    )


def _cost_estimate(n, itemsize):
    # ~8 VALU flops + 1 transcendental per element; read + write once.
    return pl.CostEstimate(flops=8 * n, transcendentals=n,
                           bytes_accessed=2 * n * itemsize)


def _gelu_call_2d(x2):
    """GELU over a 2-D slab, tiled along rows (ragged last block masked by Pallas)."""
    cfg = _tpu_config()
    rows, cols = x2.shape
    itemsize = x2.dtype.itemsize
    tile_rows = _pick_tile_rows(rows, cols, itemsize, cfg.cores, cfg.target_block_bytes)
    grid = (pl.cdiv(rows, tile_rows),)
    n = rows * cols
    return pl.pallas_call(
        _gelu_kernel,
        out_shape=jax.ShapeDtypeStruct((rows, cols), x2.dtype),
        grid_spec=pltpu.PrefetchScalarGridSpec(
            num_scalar_prefetch=0,
            grid=grid,
            in_specs=[pl.BlockSpec((tile_rows, cols), lambda i: (i, 0))],
            out_specs=pl.BlockSpec((tile_rows, cols), lambda i: (i, 0)),
        ),
        compiler_params=_compiler_params(cfg),
        cost_estimate=_cost_estimate(n, itemsize),
    )(x2)


def _gelu_call_1d(flat):
    """Very-large ragged fallback: 1-D blocked grid, ragged last block masked."""
    cfg = _tpu_config()
    (n,) = flat.shape
    itemsize = flat.dtype.itemsize
    blk = min(_RAGGED_1D_BLOCK_ELEMS, _round_up(n, 1024))
    grid = (pl.cdiv(n, blk),)
    return pl.pallas_call(
        _gelu_kernel,
        out_shape=jax.ShapeDtypeStruct((n,), flat.dtype),
        grid_spec=pltpu.PrefetchScalarGridSpec(
            num_scalar_prefetch=0,
            grid=grid,
            in_specs=[pl.BlockSpec((blk,), lambda i: (i,))],
            out_specs=pl.BlockSpec((blk,), lambda i: (i,)),
        ),
        compiler_params=_compiler_params(cfg),
        cost_estimate=_cost_estimate(n, itemsize),
    )(flat)


def gelu(x):
    """Tanh-approx GELU, elementwise, any shape / float dtype."""
    orig_shape = x.shape
    n = x.size
    if n == 0:
        return x

    flat = x.reshape(-1)
    itemsize = x.dtype.itemsize
    w = _pick_lane_width(n, min_rows=_sublane_pack(itemsize))
    if w is not None:
        # Free reshape into a lane-dense slab: no pad, no slice, no extra HBM traffic.
        return _gelu_call_2d(flat.reshape(n // w, w)).reshape(orig_shape)

    # Element count not a multiple of 128 (rare).  No pad/slice round trips:
    if n * itemsize <= _RAGGED_SINGLE_BLOCK_BYTES:
        # Single full-extent (1, n) block — full-dim block shapes are always legal.
        return _gelu_call_2d(flat.reshape(1, n)).reshape(orig_shape)
    # Huge and ragged: 1-D blocked grid; Pallas masks the ragged last block.
    return _gelu_call_1d(flat).reshape(orig_shape)


def _gelu_ref(x):
    xf = x.astype(jnp.float32)
    return (0.5 * xf * (1.0 + jnp.tanh(_SQRT_2_OVER_PI *
                                       (xf + _GELU_COEF * xf ** 3)))).astype(x.dtype)


if __name__ == "__main__":
    key = jax.random.PRNGKey(0)
    k1, k2, k3, k4 = jax.random.split(key, 4)

    # 1) Small NCHW-like input consistent with typical usage: (2, 4, 16, 16).
    x1 = jax.random.normal(k1, (2, 4, 16, 16), dtype=jnp.float32)
    y1 = jax.block_until_ready(gelu(x1))
    assert y1.shape == x1.shape and y1.dtype == x1.dtype
    assert jnp.allclose(y1, _gelu_ref(x1), atol=1e-5, rtol=1e-5)

    # 2) Ragged element count (105, not a multiple of 128) -> single (1, n) block.
    x2 = jax.random.normal(k2, (3, 5, 7), dtype=jnp.float32)
    y2 = jax.block_until_ready(gelu(x2))
    assert y2.shape == x2.shape
    assert jnp.allclose(y2, _gelu_ref(x2), atol=1e-5, rtol=1e-5)

    # 3) Multi-step grid with a ragged last row-block (1028 rows x 2048 lanes, f32).
    x3 = jax.random.normal(k3, (1028, 2048), dtype=jnp.float32)
    y3 = jax.block_until_ready(gelu(x3))
    assert jnp.allclose(y3, _gelu_ref(x3), atol=1e-5, rtol=1e-5)

    # 4) bf16 path (16-row sublane pack).
    x4 = jax.random.normal(k4, (4, 128, 384), dtype=jnp.bfloat16)
    y4 = jax.block_until_ready(gelu(x4))
    assert y4.dtype == jnp.bfloat16
    assert jnp.allclose(y4.astype(jnp.float32), _gelu_ref(x4).astype(jnp.float32),
                        atol=2e-2, rtol=2e-2)

    print("KERNEL_OK")
</pallas_src>

<mosaic_0001>
module attributes {stable_mosaic.version = 11 : i64} {
  func.func @_gelu_kernel(%arg0: i32, %arg1: memref<8x256xf32, #tpu.memory_space<vmem>>, %arg2: memref<8x256xf32, #tpu.memory_space<vmem>>) attributes {dimension_semantics = [#tpu.dimension_semantics<parallel>], iteration_bounds = array<i64: 1>, scalar_prefetch = 0 : i64, scratch_operands = 0 : i64, tpu.core_type = #tpu.core_type<tc>, window_params = [{transform_indices = @transform_0, window_bounds = array<i64: 8, 256>}, {transform_indices = @transform_1, window_bounds = array<i64: 8, 256>}]} {
    %c0 = arith.constant 0 : index
    %c0_0 = arith.constant 0 : index
    %0 = vector.load %arg1[%c0, %c0_0] : memref<8x256xf32, #tpu.memory_space<vmem>>, vector<8x256xf32>
    %1 = arith.mulf %0, %0 : vector<8x256xf32>
    %2 = arith.mulf %1, %0 : vector<8x256xf32>
    %cst = arith.constant 4.471500e-02 : f32
    %3 = vector.broadcast %cst : f32 to vector<8x256xf32>
    %4 = arith.mulf %3, %2 : vector<8x256xf32>
    %5 = arith.addf %0, %4 : vector<8x256xf32>
    %cst_1 = arith.constant 0.797884583 : f32
    %6 = vector.broadcast %cst_1 : f32 to vector<8x256xf32>
    %7 = arith.mulf %6, %5 : vector<8x256xf32>
    %cst_2 = arith.constant 5.000000e-01 : f32
    %8 = vector.broadcast %cst_2 : f32 to vector<8x256xf32>
    %9 = arith.mulf %8, %0 : vector<8x256xf32>
    %10 = math.tanh %7 : vector<8x256xf32>
    %cst_3 = arith.constant 1.000000e+00 : f32
    %11 = vector.broadcast %cst_3 : f32 to vector<8x256xf32>
    %12 = arith.addf %11, %10 : vector<8x256xf32>
    %13 = arith.mulf %9, %12 : vector<8x256xf32>
    %c0_4 = arith.constant 0 : index
    %c0_5 = arith.constant 0 : index
    %14 = vector.load %arg2[%c0_4, %c0_5] : memref<8x256xf32, #tpu.memory_space<vmem>>, vector<8x256xf32>
    tpu.vector_store %arg2[%c0_4, %c0_5], %13 {strides = array<i32>} : memref<8x256xf32, #tpu.memory_space<vmem>>, vector<8x256xf32>,
    return
  }
  func.func @transform_0(%arg0: i32) -> (i32, i32) {
    %c0_i32 = arith.constant 0 : i32
    %c0_i32_0 = arith.constant 0 : i32
    return %arg0, %c0_i32 : i32, i32
  }
  func.func @transform_1(%arg0: i32) -> (i32, i32) {
    %c0_i32 = arith.constant 0 : i32
    %c0_i32_0 = arith.constant 0 : i32
    return %arg0, %c0_i32 : i32, i32
  }
}

</mosaic_0001>

<llo_original>
// kernel: tpu_custom_call.1
$region0: #{tpu_custom_call.1}
  #allocation0 [shape = 'u32[]', space=smem, size = 0x4, offset = 0x4, fixed_abs, tag = 'smem constant byte address 0x4 - core index']
  #allocation1 [shape = 'u32[144,128]{1,0:T(1,128)}', space=vmem, size = 0x12000, scoped, tag = 'internal scratch']
  %s0 = inlined_call_operand.hbm [shape: f32[8,256], index: 0, kind: input, shape index: {}]
  %s1 = inlined_call_operand.hbm [shape: f32[8,256], index: 1, kind: output, shape index: {}]
  %s2 = sld [smem:[#allocation0]]
  $region18: #{tpu_custom_call.1} parent=0
    _
  %s4 = ssub.s32 1, %s2
  %s5 = scalar_select 0, %s4, %s2
  $region1: #{tpu_custom_call.1} parent=0
    #allocation2 [shape = 'u8[8192]{0}', space=vmem, size = 0x2000, scoped, tag = 'input window, operand 0, single buffered']
    #allocation3 [shape = 's32[1]{0}', space=sflag, size = 0x4, scoped, tag = 'scoped memory for tpu_custom_call.1']
    #allocation4 [shape = 's32[1]{0}', space=sflag, size = 0x4, scoped, tag = 'scoped memory for tpu_custom_call.1']
    #allocation5 [shape = 'u8[8192]{0}', space=vmem, size = 0x2000, scoped, tag = 'output window, operand 0, single buffered']
    %6 = vsyncpa [#allocation3], 0
    %7 = vsyncpa [#allocation4], 0
    // Predicated region
    $region2: #{tpu_custom_call.1} parent=1 // pred_check
      _
    $region3: #{tpu_custom_call.1} parent=1 // pred_check_branch
      %9 = sbr.rel (0) target = $region5
    $region4: #{tpu_custom_call.1} parent=1 // pred_region
      %s11 = ssub.s32 256, 256
      %12 = vsyncadd [#allocation3], %s11
      %s14 = sshll.u32 [#allocation2], 4
      %s15 = int_to_ptr.vmem [resolvable:$true] %s14
      %17 = dma.hbm_to_vmem [thread:$0]  %s0, 256, %s15, [#allocation3]
    $region5: #{tpu_custom_call.1} parent=1 // pred_fallthru
      _
    // Predicated region
    $region6: #{tpu_custom_call.1} parent=1 // pred_check
      _
    $region7: #{tpu_custom_call.1} parent=1 // pred_check_branch
      %19 = sbr.rel (0) target = $region9
    $region8: #{tpu_custom_call.1} parent=1 // pred_region
      %20 = dma.done [#allocation3], 256
    $region9: #{tpu_custom_call.1} parent=1 // pred_fallthru
      _
    %v21 = vld [vmem:[#allocation2] sm:$0xff]
    %v22 = vld [vmem:[#allocation2 + $0x8] sm:$0xff]
    %v23 = vmul.f32 %v21, %v21
    %v24 = vmul.f32 %v22, %v22
    %v25 = vmul.f32 %v23, %v21
    %v26 = vmul.f32 %v24, %v22
    %v27 = vmul.f32 %v25, 0.044715
    %v28 = vmul.f32 %v26, 0.044715
    %v29 = vadd.f32 %v21, %v27
    %v30 = vadd.f32 %v22, %v28
    %v31 = vmul.f32 %v29, 0.7978846
    %v32 = vmul.f32 %v30, 0.7978846
    %v33 = vmul.f32 %v21, 0.5
    %v34 = vmul.f32 %v22, 0.5
    %v35 = vtanh.pop %v31
    %v36 = vtanh.pop %v32
    %v37 = vadd.f32 %v35, 1.0
    %v38 = vadd.f32 %v36, 1.0
    %v39 = vmul.f32 %v33, %v37
    %v40 = vmul.f32 %v34, %v38
    %41 = vst [vmem:[#allocation5] sm:$0xff] %v39
    %42 = vst [vmem:[#allocation5 + $0x8] sm:$0xff] %v40
    // Predicated region
    $region10: #{tpu_custom_call.1} parent=1 // pred_check
      _
    $region11: #{tpu_custom_call.1} parent=1 // pred_check_branch
      %44 = sbr.rel (0) target = $region13
    $region12: #{tpu_custom_call.1} parent=1 // pred_region
      %s46 = ssub.s32 256, 256
      %47 = vsyncadd [#allocation4], %s46
      %s49 = sshll.u32 [#allocation5], 4
      %s50 = int_to_ptr.vmem [resolvable:$true] %s49
      %52 = dma.vmem_to_hbm [thread:$0]  %s50, 256, %s1, [#allocation4]
    $region13: #{tpu_custom_call.1} parent=1 // pred_fallthru
      _
    // Predicated region
    $region14: #{tpu_custom_call.1} parent=1 // pred_check
      _
    $region15: #{tpu_custom_call.1} parent=1 // pred_check_branch
      %54 = sbr.rel (0) target = $region17
    $region16: #{tpu_custom_call.1} parent=1 // pred_region
      %55 = dma.done [#allocation4], 256
    $region17: #{tpu_custom_call.1} parent=1 // pred_fallthru
      _
    %56 = vsyncpa [#allocation3], 1
    %57 = vsyncpa [#allocation4], 1

</llo_original>
